<compile_context>
chip_gen: v6e
topology: v6e:2x2x1
jax: 0.10.0
libtpu: 0.0.40
codegen_flags: <defaults>
</compile_context>

<pallas_src>
import functools

import jax
import jax.numpy as jnp
from jax import lax
from jax.experimental import pallas as pl
from jax.experimental.pallas import tpu as pltpu


# ----------------------------------------------------------------------------
# Small helpers
# ----------------------------------------------------------------------------
def _round_up(x, m):
    return ((x + m - 1) // m) * m


def _padded_block_bytes(tb, rows, c):
    # Padded f32-equivalent VMEM footprint of a (tb, rows, c) block: the last
    # two dims tile as (8, 128) and the in-kernel compute copy is f32.
    return tb * _round_up(max(rows, 1), 8) * _round_up(c, 128) * 4


# Per-step padded block budget: 4x this (double-buffered in + out) stays under
# v5e's 16 MiB scoped-VMEM default and far under v7x's 64 MiB physical VMEM.
_BLOCK_BUDGET_BYTES = 3 << 20


def _pick_batch_tile(B, S, C, *, budget_bytes=_BLOCK_BUDGET_BYTES, min_grid=2):
    """Largest batch tile whose PADDED block fits the budget, keeping the grid
    at >= min_grid steps when possible (v7x has 2 TensorCores per chip)."""
    per_batch = _padded_block_bytes(1, S, C)
    tb = max(1, min(B, budget_bytes // max(per_batch, 1)))
    if B >= min_grid:
        tb = min(tb, pl.cdiv(B, min_grid))
    return int(tb)


def _vmem_limit(block_bytes, *, headroom=4 << 20, cap=48 << 20):
    # Each pipelined block is double-buffered; add headroom for compute copies.
    return int(min(2 * sum(block_bytes) + headroom, cap))


# ----------------------------------------------------------------------------
# Kernels
# ----------------------------------------------------------------------------
def _revin_norm_kernel(*refs, affine, subtract_last, eps):
    if affine:
        x_ref, w_ref, b_ref, y_ref, stats_ref = refs
    else:
        x_ref, y_ref, stats_ref = refs

    # x_ref block: (TB, S, C)
    x = x_ref[...]
    xf = x.astype(jnp.float32)

    # One reduction pass for the mean; reuse it as the center when
    # subtract_last=False (torch.var always uses the mean regardless).
    mu = jnp.mean(xf, axis=1, keepdims=True)                     # (TB, 1, C)
    center = xf[:, -1:, :] if subtract_last else mu              # (TB, 1, C)

    d = xf - mu
    var = jnp.mean(d * d, axis=1, keepdims=True)                 # (TB, 1, C)

    # rsqrt goes to the EUP slot (free in this mem-bound kernel);
    # scale == sqrt(var + eps) up to rounding.
    inv_scale = lax.rsqrt(var + eps)                             # (TB, 1, C)
    scale = (var + eps) * inv_scale                              # (TB, 1, C)

    if affine:
        w = w_ref[...].astype(jnp.float32)                       # (1, 1, C)
        b = b_ref[...].astype(jnp.float32)                       # (1, 1, C)
        g = w * inv_scale                                        # (TB, 1, C)
        h = b - center * g                                       # (TB, 1, C)
    else:
        g = inv_scale
        h = -center * g

    # Hot path: single broadcast FMA over the (TB, S, C) block.  For bf16
    # inputs keep the bulk FMA in bf16 (bf16 VALUs on v6e/v7x); stats stay f32.
    if x.dtype == jnp.bfloat16:
        y = x * g.astype(jnp.bfloat16) + h.astype(jnp.bfloat16)
    else:
        y = xf * g + h
    y_ref[...] = y.astype(y_ref.dtype)

    # Fused stats writeback in a single store: row 0 = center, row 1 = scale.
    stats_ref[...] = jnp.concatenate([center, scale],
                                     axis=1).astype(stats_ref.dtype)


def _revin_denorm_kernel(*refs, affine, eps):
    if affine:
        x_ref, stats_ref, w_ref, b_ref, y_ref = refs
    else:
        x_ref, stats_ref, y_ref = refs

    # x_ref block: (TB, P, C)
    x = x_ref[...]
    center = stats_ref[:, 0:1, :].astype(jnp.float32)            # (TB, 1, C)
    scale = stats_ref[:, 1:2, :].astype(jnp.float32)             # (TB, 1, C)

    if affine:
        w = w_ref[...].astype(jnp.float32)                       # (1, 1, C)
        b = b_ref[...].astype(jnp.float32)                       # (1, 1, C)
        a = scale * pl.reciprocal(w + eps ** 2)                  # (TB, 1, C)
        c2 = center - b * a                                      # (TB, 1, C)
    else:
        a = scale
        c2 = center

    if x.dtype == jnp.bfloat16:
        y = x * a.astype(jnp.bfloat16) + c2.astype(jnp.bfloat16)
    else:
        y = x.astype(jnp.float32) * a + c2
    y_ref[...] = y.astype(y_ref.dtype)


# ----------------------------------------------------------------------------
# Pallas wrappers
# ----------------------------------------------------------------------------
def revin_norm(x, weight, bias, *, affine, subtract_last, eps):
    B, S, C = x.shape
    tb = _pick_batch_tile(B, S, C)
    grid = (pl.cdiv(B, tb),)

    kernel = functools.partial(
        _revin_norm_kernel, affine=affine, subtract_last=subtract_last, eps=eps)

    in_specs = [pl.BlockSpec((tb, S, C), lambda b: (b, 0, 0))]
    args = [x]
    block_bytes = [
        _padded_block_bytes(tb, S, C),   # x
        _padded_block_bytes(tb, S, C),   # y
        _padded_block_bytes(tb, 2, C),   # stats
    ]
    if affine:
        in_specs += [pl.BlockSpec((1, 1, C), lambda b: (0, 0, 0)),
                     pl.BlockSpec((1, 1, C), lambda b: (0, 0, 0))]
        args += [weight.reshape(1, 1, C).astype(jnp.float32),
                 bias.reshape(1, 1, C).astype(jnp.float32)]
        block_bytes += [_padded_block_bytes(1, 1, C)] * 2

    y, stats = pl.pallas_call(
        kernel,
        out_shape=(
            jax.ShapeDtypeStruct((B, S, C), x.dtype),
            jax.ShapeDtypeStruct((B, 2, C), jnp.float32),
        ),
        grid=grid,
        in_specs=in_specs,
        out_specs=(
            pl.BlockSpec((tb, S, C), lambda b: (b, 0, 0)),
            pl.BlockSpec((tb, 2, C), lambda b: (b, 0, 0)),
        ),
        compiler_params=pltpu.CompilerParams(
            dimension_semantics=("parallel",),
            vmem_limit_bytes=_vmem_limit(block_bytes)),
    )(*args)
    return y, stats


def revin_denorm(x, stats, weight, bias, *, affine, eps):
    B, P, C = x.shape
    tb = _pick_batch_tile(B, P, C)
    grid = (pl.cdiv(B, tb),)

    kernel = functools.partial(_revin_denorm_kernel, affine=affine, eps=eps)

    in_specs = [pl.BlockSpec((tb, P, C), lambda b: (b, 0, 0)),
                pl.BlockSpec((tb, 2, C), lambda b: (b, 0, 0))]
    args = [x, stats]
    block_bytes = [
        _padded_block_bytes(tb, P, C),   # x
        _padded_block_bytes(tb, 2, C),   # stats
        _padded_block_bytes(tb, P, C),   # y
    ]
    if affine:
        in_specs += [pl.BlockSpec((1, 1, C), lambda b: (0, 0, 0)),
                     pl.BlockSpec((1, 1, C), lambda b: (0, 0, 0))]
        args += [weight.reshape(1, 1, C).astype(jnp.float32),
                 bias.reshape(1, 1, C).astype(jnp.float32)]
        block_bytes += [_padded_block_bytes(1, 1, C)] * 2

    y = pl.pallas_call(
        kernel,
        out_shape=jax.ShapeDtypeStruct((B, P, C), x.dtype),
        grid=grid,
        in_specs=in_specs,
        out_specs=pl.BlockSpec((tb, P, C), lambda b: (b, 0, 0)),
        compiler_params=pltpu.CompilerParams(
            dimension_semantics=("parallel",),
            vmem_limit_bytes=_vmem_limit(block_bytes)),
    )(*args)
    return y


# ----------------------------------------------------------------------------
# Module-like wrapper (mirrors the PyTorch RevIN stateful behavior)
# ----------------------------------------------------------------------------
class RevINPallas:
    def __init__(self, num_features, affine, subtract_last, eps=1e-5):
        self.num_features = num_features
        self.affine = affine
        self.subtract_last = subtract_last
        self.eps = eps
        self.stats = None  # (B, 2, C): row 0 = center, row 1 = scale
        if affine:
            self.weight = jnp.ones((num_features,), jnp.float32)
            self.bias = jnp.zeros((num_features,), jnp.float32)
        else:
            self.weight = None
            self.bias = None

    @property
    def center(self):
        return None if self.stats is None else self.stats[:, 0:1, :]

    @property
    def scale(self):
        return None if self.stats is None else self.stats[:, 1:2, :]

    def __call__(self, x, mode):
        assert mode in {"norm", "denorm"}
        if mode == "norm":
            y, stats = revin_norm(
                x, self.weight, self.bias,
                affine=self.affine, subtract_last=self.subtract_last,
                eps=self.eps)
            self.stats = stats
            return y
        else:
            assert self.stats is not None
            return revin_denorm(
                x, self.stats, self.weight, self.bias,
                affine=self.affine, eps=self.eps)


# ----------------------------------------------------------------------------
# Pure-JAX reference (correctness check)
# ----------------------------------------------------------------------------
def _ref_norm(x, w, b, affine, subtract_last, eps):
    x = x.astype(jnp.float32)
    center = x[:, -1:, :] if subtract_last else jnp.mean(x, axis=1, keepdims=True)
    var = jnp.var(x, axis=1, keepdims=True)  # unbiased=False
    scale = jnp.sqrt(var + eps)
    y = (x - center) / scale
    if affine:
        y = w * y + b
    return y, center, scale


def _ref_denorm(x, center, scale, w, b, affine, eps):
    x = x.astype(jnp.float32)
    if affine:
        x = (x - b) / (w + eps ** 2)
    return x * scale + center


if __name__ == "__main__":
    key = jax.random.PRNGKey(0)
    B, S, C = 2, 8, 4          # batch x seq_len x n_vars
    P = 6                      # prediction length for the denorm path
    k1, k2, k3 = jax.random.split(key, 3)
    x = jax.random.normal(k1, (B, S, C), dtype=jnp.float32) * 2.0 + 0.5
    x_pred = jax.random.normal(k2, (B, P, C), dtype=jnp.float32)
    eps = 1e-5

    # --- Case 1: affine=True, subtract_last=False ---------------------------
    revin = RevINPallas(num_features=C, affine=True, subtract_last=False, eps=eps)

    y = revin(x, "norm")
    jax.block_until_ready(y)
    y_ref, c_ref, s_ref = _ref_norm(x, revin.weight, revin.bias,
                                    affine=True, subtract_last=False, eps=eps)
    assert jnp.allclose(y, y_ref, atol=1e-5, rtol=1e-5)
    assert jnp.allclose(revin.center, c_ref, atol=1e-5)
    assert jnp.allclose(revin.scale, s_ref, atol=1e-5)

    z = revin(x_pred, "denorm")
    jax.block_until_ready(z)
    z_ref = _ref_denorm(x_pred, c_ref, s_ref, revin.weight, revin.bias,
                        affine=True, eps=eps)
    assert jnp.allclose(z, z_ref, atol=1e-5, rtol=1e-5)

    # round-trip sanity: denorm(norm(x)) ~= x
    x_rt = revin(y, "denorm")
    jax.block_until_ready(x_rt)
    assert jnp.allclose(x_rt, x, atol=1e-4, rtol=1e-4)

    # --- Case 2: affine=False, subtract_last=True ---------------------------
    revin2 = RevINPallas(num_features=C, affine=False, subtract_last=True, eps=eps)
    y2 = revin2(x, "norm")
    jax.block_until_ready(y2)
    y2_ref, c2_ref, s2_ref = _ref_norm(x, None, None,
                                       affine=False, subtract_last=True, eps=eps)
    assert jnp.allclose(y2, y2_ref, atol=1e-5, rtol=1e-5)
    assert jnp.allclose(revin2.center, c2_ref, atol=1e-5)
    assert jnp.allclose(revin2.scale, s2_ref, atol=1e-5)

    x2_rt = revin2(y2, "denorm")
    jax.block_until_ready(x2_rt)
    assert jnp.allclose(x2_rt, x, atol=1e-4, rtol=1e-4)

    # --- Case 3: non-divisor batch (partial last block via cdiv grid) -------
    B3, S3, C3, P3 = 3, 16, 7, 4
    k4, k5 = jax.random.split(k3)
    x3 = jax.random.normal(k4, (B3, S3, C3), dtype=jnp.float32) * 1.5 - 0.3
    x3p = jax.random.normal(k5, (B3, P3, C3), dtype=jnp.float32)
    revin3 = RevINPallas(num_features=C3, affine=True, subtract_last=False, eps=eps)
    y3 = revin3(x3, "norm")
    jax.block_until_ready(y3)
    y3_ref, c3_ref, s3_ref = _ref_norm(x3, revin3.weight, revin3.bias,
                                       affine=True, subtract_last=False, eps=eps)
    assert jnp.allclose(y3, y3_ref, atol=1e-5, rtol=1e-5)
    z3 = revin3(x3p, "denorm")
    jax.block_until_ready(z3)
    z3_ref = _ref_denorm(x3p, c3_ref, s3_ref, revin3.weight, revin3.bias,
                         affine=True, eps=eps)
    assert jnp.allclose(z3, z3_ref, atol=1e-5, rtol=1e-5)

    # --- Case 4: bf16 input (bf16 hot FMA path, f32 stats) ------------------
    xb = x.astype(jnp.bfloat16)
    revin4 = RevINPallas(num_features=C, affine=True, subtract_last=False, eps=eps)
    y4 = revin4(xb, "norm")
    jax.block_until_ready(y4)
    y4_ref, _, _ = _ref_norm(xb, revin4.weight, revin4.bias,
                             affine=True, subtract_last=False, eps=eps)
    assert jnp.allclose(y4.astype(jnp.float32), y4_ref, atol=5e-2, rtol=5e-2)

    print("KERNEL_OK")
</pallas_src>

<mosaic_0001>
module attributes {stable_mosaic.version = 11 : i64} {
  func.func @_revin_norm_kernel(%arg0: i32, %arg1: memref<1x8x4xf32, #tpu.memory_space<vmem>>, %arg2: memref<1x1x4xf32, #tpu.memory_space<vmem>>, %arg3: memref<1x1x4xf32, #tpu.memory_space<vmem>>, %arg4: memref<1x8x4xf32, #tpu.memory_space<vmem>>, %arg5: memref<1x2x4xf32, #tpu.memory_space<vmem>>) attributes {dimension_semantics = [#tpu.dimension_semantics<parallel>], iteration_bounds = array<i64: 2>, scalar_prefetch = 0 : i64, scratch_operands = 0 : i64, tpu.core_type = #tpu.core_type<tc>, window_params = [{transform_indices = @transform_0, window_bounds = array<i64: 1, 8, 4>}, {pipeline_mode = #tpu.pipeline_mode<synchronous>, transform_indices = @transform_1, window_bounds = array<i64: 1, 1, 4>}, {pipeline_mode = #tpu.pipeline_mode<synchronous>, transform_indices = @transform_2, window_bounds = array<i64: 1, 1, 4>}, {transform_indices = @transform_3, window_bounds = array<i64: 1, 8, 4>}, {transform_indices = @transform_4, window_bounds = array<i64: 1, 2, 4>}]} {
    %c0 = arith.constant 0 : index
    %c0_0 = arith.constant 0 : index
    %c0_1 = arith.constant 0 : index
    %0 = vector.load %arg1[%c0, %c0_0, %c0_1] : memref<1x8x4xf32, #tpu.memory_space<vmem>>, vector<1x8x4xf32>
    %cst = arith.constant dense<0.000000e+00> : vector<1x4xf32>
    %1 = vector.multi_reduction <add>, %0, %cst [1] : vector<1x8x4xf32> to vector<1x4xf32>
    %2 = vector.shape_cast %1 : vector<1x4xf32> to vector<1x1x4xf32>
    %cst_2 = arith.constant 8.000000e+00 : f32
    %3 = vector.broadcast %cst_2 : f32 to vector<1x1x4xf32>
    %4 = arith.divf %2, %3 : vector<1x1x4xf32>
    %5 = vector.broadcast %4 : vector<1x1x4xf32> to vector<1x8x4xf32>
    %6 = arith.subf %0, %5 : vector<1x8x4xf32>
    %7 = arith.mulf %6, %6 : vector<1x8x4xf32>
    %cst_3 = arith.constant dense<0.000000e+00> : vector<1x4xf32>
    %8 = vector.multi_reduction <add>, %7, %cst_3 [1] : vector<1x8x4xf32> to vector<1x4xf32>
    %9 = vector.shape_cast %8 : vector<1x4xf32> to vector<1x1x4xf32>
    %cst_4 = arith.constant 8.000000e+00 : f32
    %10 = vector.broadcast %cst_4 : f32 to vector<1x1x4xf32>
    %11 = arith.divf %9, %10 : vector<1x1x4xf32>
    %cst_5 = arith.constant 9.99999974E-6 : f32
    %12 = vector.broadcast %cst_5 : f32 to vector<1x1x4xf32>
    %13 = arith.addf %11, %12 : vector<1x1x4xf32>
    %14 = math.rsqrt %13 : vector<1x1x4xf32>
    %cst_6 = arith.constant 9.99999974E-6 : f32
    %15 = vector.broadcast %cst_6 : f32 to vector<1x1x4xf32>
    %16 = arith.addf %11, %15 : vector<1x1x4xf32>
    %17 = arith.mulf %16, %14 : vector<1x1x4xf32>
    %c0_7 = arith.constant 0 : index
    %c0_8 = arith.constant 0 : index
    %c0_9 = arith.constant 0 : index
    %18 = vector.load %arg2[%c0_7, %c0_8, %c0_9] : memref<1x1x4xf32, #tpu.memory_space<vmem>>, vector<1x1x4xf32>
    %c0_10 = arith.constant 0 : index
    %c0_11 = arith.constant 0 : index
    %c0_12 = arith.constant 0 : index
    %19 = vector.load %arg3[%c0_10, %c0_11, %c0_12] : memref<1x1x4xf32, #tpu.memory_space<vmem>>, vector<1x1x4xf32>
    %20 = arith.mulf %18, %14 : vector<1x1x4xf32>
    %21 = arith.mulf %4, %20 : vector<1x1x4xf32>
    %22 = arith.subf %19, %21 : vector<1x1x4xf32>
    %23 = vector.broadcast %20 : vector<1x1x4xf32> to vector<1x8x4xf32>
    %24 = arith.mulf %0, %23 : vector<1x8x4xf32>
    %25 = vector.broadcast %22 : vector<1x1x4xf32> to vector<1x8x4xf32>
    %26 = arith.addf %24, %25 : vector<1x8x4xf32>
    %c0_13 = arith.constant 0 : index
    %c0_14 = arith.constant 0 : index
    %c0_15 = arith.constant 0 : index
    %27 = vector.load %arg4[%c0_13, %c0_14, %c0_15] : memref<1x8x4xf32, #tpu.memory_space<vmem>>, vector<1x8x4xf32>
    tpu.vector_store %arg4[%c0_13, %c0_14, %c0_15], %26 {strides = array<i32>} : memref<1x8x4xf32, #tpu.memory_space<vmem>>, vector<1x8x4xf32>,
    %28 = tpu.concatenate %4, %17 in 1 : vector<1x1x4xf32>, vector<1x1x4xf32> -> vector<1x2x4xf32>
    %c0_16 = arith.constant 0 : index
    %c0_17 = arith.constant 0 : index
    %c0_18 = arith.constant 0 : index
    %29 = vector.load %arg5[%c0_16, %c0_17, %c0_18] : memref<1x2x4xf32, #tpu.memory_space<vmem>>, vector<1x2x4xf32>
    tpu.vector_store %arg5[%c0_16, %c0_17, %c0_18], %28 {strides = array<i32>} : memref<1x2x4xf32, #tpu.memory_space<vmem>>, vector<1x2x4xf32>,
    return
  }
  func.func @transform_0(%arg0: i32) -> (i32, i32, i32) {
    %c0_i32 = arith.constant 0 : i32
    %c0_i32_0 = arith.constant 0 : i32
    %c0_i32_1 = arith.constant 0 : i32
    return %arg0, %c0_i32, %c0_i32_0 : i32, i32, i32
  }
  func.func @transform_1(%arg0: i32) -> (i32, i32, i32) {
    %c0_i32 = arith.constant 0 : i32
    %c0_i32_0 = arith.constant 0 : i32
    %c0_i32_1 = arith.constant 0 : i32
    %c0_i32_2 = arith.constant 0 : i32
    return %c0_i32, %c0_i32_0, %c0_i32_1 : i32, i32, i32
  }
  func.func @transform_2(%arg0: i32) -> (i32, i32, i32) {
    %c0_i32 = arith.constant 0 : i32
    %c0_i32_0 = arith.constant 0 : i32
    %c0_i32_1 = arith.constant 0 : i32
    %c0_i32_2 = arith.constant 0 : i32
    return %c0_i32, %c0_i32_0, %c0_i32_1 : i32, i32, i32
  }
  func.func @transform_3(%arg0: i32) -> (i32, i32, i32) {
    %c0_i32 = arith.constant 0 : i32
    %c0_i32_0 = arith.constant 0 : i32
    %c0_i32_1 = arith.constant 0 : i32
    return %arg0, %c0_i32, %c0_i32_0 : i32, i32, i32
  }
  func.func @transform_4(%arg0: i32) -> (i32, i32, i32) {
    %c0_i32 = arith.constant 0 : i32
    %c0_i32_0 = arith.constant 0 : i32
    %c0_i32_1 = arith.constant 0 : i32
    return %arg0, %c0_i32, %c0_i32_0 : i32, i32, i32
  }
}

</mosaic_0001>

<llo_original>
// kernel: tpu_custom_call.1
$region0: #{tpu_custom_call.1}
  #allocation0 [shape = 'u32[]', space=smem, size = 0x4, offset = 0x4, fixed_abs, tag = 'smem constant byte address 0x4 - core index']
  #allocation1 [shape = 'u32[144,128]{1,0:T(1,128)}', space=vmem, size = 0x12000, scoped, tag = 'internal scratch']
  %s0 = inlined_call_operand.vmem [shape: f32[2,8,4], index: 0, kind: input, shape index: {}]
  %s1 = inlined_call_operand.vmem [shape: f32[1,1,4], index: 1, kind: input, shape index: {}]
  %s2 = inlined_call_operand.vmem [shape: f32[1,1,4], index: 2, kind: input, shape index: {}]
  %s3 = inlined_call_operand.vmem [shape: f32[2,8,4], index: 3, kind: output, shape index: {0}]
  %s4 = inlined_call_operand.hbm [shape: f32[2,2,4], index: 4, kind: output, shape index: {1}]
  %5 = xla_tuple %s3, %s4
  %s6 = sld [smem:[#allocation0]]
  $region53: #{tpu_custom_call.1} parent=0
    _
  %s8 = ssub.s32 1, %s6
  %s9 = scalar_select 0, %s8, %s6
  $region1: #{tpu_custom_call.1} parent=0
    #allocation2 [shape = 'u8[2048]{0}', space=vmem, size = 0x800, scoped, tag = 'output window, operand 1']
    #allocation3 [shape = 's32[2]{0}', space=sflag, size = 0x8, scoped, tag = 'scoped memory for tpu_custom_call.1']
    %10 = vsyncpa [#allocation3], 0
    %s11 = scalar_lea.sflag [#allocation3], 1
    %12 = vsyncpa %s11, 0
    loop: start=0, step=1, limit=4
    $region2: #{tpu_custom_call.1} parent=1 // loop_pre_header
      _
    $region3: #{tpu_custom_call.1} parent=1 // loop_header
      %s14 = sphi 0, %s18
      %p15 = scmp.ge.s32.totalorder %s14, 4
      %s24 = sphi 0, %s26
      %s27 = sphi 0, %s24
      %s28 = sphi 0, %s27
      %s44 = sphi 0, %s28
      %s48 = sphi 0, %s48
      %s50 = sphi 0, %s48
      %s51 = sphi 0, %s50
      %s65 = sphi 0, %s51
      %s69 = sphi 0, %s69
      %s71 = sphi 0, %s69
      %s72 = sphi 0, %s71
      %s86 = sphi 0, %s72
      %s92 = sphi 0, %s94
      %s95 = sphi 0, %s92
      %s96 = sphi 0, %s95
      %s112 = sphi 0, %s96
      %s118 = sphi 0, %s120
      %s121 = sphi 0, %s118
      %s122 = sphi 0, %s121
      %s138 = sphi 0, %s122
    $region4: #{tpu_custom_call.1} parent=1 // loop_header_branch
      %17 = sbr.rel (%p15) target = $region8
    $region5: #{tpu_custom_call.1} parent=1 // loop_body
      %s19 = ssub.s32 %s14, 1
      %s20 = ssub.s32 %s14, 2
      %s21 = sadd.s32 %s14, 1
      %s22 = ssub.s32 %s14, %s21
      %p23 = scmp.eq.s32.totalorder %s22, 0
      %s25 = sadd.s32 %s24, 1
      %s26 = scalar_select %p23, %s24, %s25
      %p29 = pneg %p23
      %p30 = scmp.eq.s32.totalorder %s14, 1
      %p31 = por %p29, %p30
      %p32 = scmp.ne.s32.totalorder %s24, %s27
      %p33 = scmp.eq.s32.totalorder %s14, 0
      %p34 = por %p32, %p33
      %p35 = scmp.ne.s32.totalorder %s24, %s27
      %p36 = scmp.eq.s32.totalorder %s19, 1
      %p37 = por %p35, %p36
      %p38 = scmp.ne.s32.totalorder %s27, %s28
      %p39 = scmp.eq.s32.totalorder %s19, 0
      %p40 = por %p38, %p39
      %p41 = scmp.ne.s32.totalorder %s27, %s28
      %p42 = scmp.eq.s32.totalorder %s20, 1
      %p43 = por %p41, %p42
      %p45 = scmp.ne.s32.totalorder %s28, %s44
      %p46 = scmp.eq.s32.totalorder %s20, 0
      %p47 = por %p45, %p46
      %s49 = sadd.s32 %s48, 1
      %p52 = scmp.eq.s32.totalorder %s14, 1
      %p53 = scmp.ne.s32.totalorder %s48, %s50
      %p54 = scmp.eq.s32.totalorder %s14, 0
      %p55 = por %p53, %p54
      %p56 = scmp.ne.s32.totalorder %s48, %s50
      %p57 = scmp.eq.s32.totalorder %s19, 1
      %p58 = por %p56, %p57
      %p59 = scmp.ne.s32.totalorder %s50, %s51
      %p60 = scmp.eq.s32.totalorder %s19, 0
      %p61 = por %p59, %p60
      %p62 = scmp.ne.s32.totalorder %s50, %s51
      %p63 = scmp.eq.s32.totalorder %s20, 1
      %p64 = por %p62, %p63
      %p66 = scmp.ne.s32.totalorder %s51, %s65
      %p67 = scmp.eq.s32.totalorder %s20, 0
      %p68 = por %p66, %p67
      %s70 = sadd.s32 %s69, 1
      %p73 = scmp.eq.s32.totalorder %s14, 1
      %p74 = scmp.ne.s32.totalorder %s69, %s71
      %p75 = scmp.eq.s32.totalorder %s14, 0
      %p76 = por %p74, %p75
      %p77 = scmp.ne.s32.totalorder %s69, %s71
      %p78 = scmp.eq.s32.totalorder %s19, 1
      %p79 = por %p77, %p78
      %p80 = scmp.ne.s32.totalorder %s71, %s72
      %p81 = scmp.eq.s32.totalorder %s19, 0
      %p82 = por %p80, %p81
      %p83 = scmp.ne.s32.totalorder %s71, %s72
      %p84 = scmp.eq.s32.totalorder %s20, 1
      %p85 = por %p83, %p84
      %p87 = scmp.ne.s32.totalorder %s72, %s86
      %p88 = scmp.eq.s32.totalorder %s20, 0
      %p89 = por %p87, %p88
      %s90 = ssub.s32 %s14, %s21
      %p91 = scmp.eq.s32.totalorder %s90, 0
      %s93 = sadd.s32 %s92, 1
      %s94 = scalar_select %p91, %s92, %s93
      %p97 = pneg %p91
      %p98 = scmp.eq.s32.totalorder %s14, 1
      %p99 = por %p97, %p98
      %p100 = scmp.ne.s32.totalorder %s92, %s95
      %p101 = scmp.eq.s32.totalorder %s14, 0
      %p102 = por %p100, %p101
      %p103 = scmp.ne.s32.totalorder %s92, %s95
      %p104 = scmp.eq.s32.totalorder %s19, 1
      %p105 = por %p103, %p104
      %p106 = scmp.ne.s32.totalorder %s95, %s96
      %p107 = scmp.eq.s32.totalorder %s19, 0
      %p108 = por %p106, %p107
      %p109 = scmp.ne.s32.totalorder %s95, %s96
      %p110 = scmp.eq.s32.totalorder %s20, 1
      %p111 = por %p109, %p110
      %p113 = scmp.ne.s32.totalorder %s96, %s112
      %p114 = scmp.eq.s32.totalorder %s20, 0
      %p115 = por %p113, %p114
      %s116 = ssub.s32 %s14, %s21
      %p117 = scmp.eq.s32.totalorder %s116, 0
      %s119 = sadd.s32 %s118, 1
      %s120 = scalar_select %p117, %s118, %s119
      %p123 = pneg %p117
      %p124 = scmp.eq.s32.totalorder %s14, 1
      %p125 = por %p123, %p124
      %p126 = scmp.ne.s32.totalorder %s118, %s121
      %p127 = scmp.eq.s32.totalorder %s14, 0
      %p128 = por %p126, %p127
      %p129 = scmp.ne.s32.totalorder %s118, %s121
      %p130 = scmp.eq.s32.totalorder %s19, 1
      %p131 = por %p129, %p130
      %p132 = scmp.ne.s32.totalorder %s121, %s122
      %p133 = scmp.eq.s32.totalorder %s19, 0
      %p134 = por %p132, %p133
      %p135 = scmp.ne.s32.totalorder %s121, %s122
      %p136 = scmp.eq.s32.totalorder %s20, 1
      %p137 = por %p135, %p136
      %p139 = scmp.ne.s32.totalorder %s122, %s138
      %p140 = scmp.eq.s32.totalorder %s20, 0
      %p141 = por %p139, %p140
      %p142 = scmp.le.s32.totalorder 1, %s14
      %p143 = scmp.lt.s32.totalorder %s14, 3
      %p144 = pnand %p142, %p143
      %p145 = pneg %p144
      // Predicated region
      $region9: #{tpu_custom_call.1} parent=5 // pred_check
        _
      $region10: #{tpu_custom_call.1} parent=5 // pred_check_branch
        %147 = sbr.rel (%p144) target = $region12
      $region11: #{tpu_custom_call.1} parent=5 // pred_region
        %s148 = ssub.s32 %s14, 1
        // Predicated region
        $region13: #{tpu_custom_call.1} parent=11 // pred_check
          %p149 = pneg %p61
        $region14: #{tpu_custom_call.1} parent=11 // pred_check_branch
          %151 = sbr.rel (%p149) target = $region16
        $region15: #{tpu_custom_call.1} parent=11 // pred_region
          _
        $region16: #{tpu_custom_call.1} parent=11 // pred_fallthru
          _
        // Predicated region
        $region17: #{tpu_custom_call.1} parent=11 // pred_check
          %p152 = pneg %p82
        $region18: #{tpu_custom_call.1} parent=11 // pred_check_branch
          %154 = sbr.rel (%p152) target = $region20
        $region19: #{tpu_custom_call.1} parent=11 // pred_region
          _
        $region20: #{tpu_custom_call.1} parent=11 // pred_fallthru
          _
      $region12: #{tpu_custom_call.1} parent=5 // pred_fallthru
        _
      %p155 = scmp.lt.s32.totalorder %s14, 2
      // Predicated region
      $region21: #{tpu_custom_call.1} parent=5 // pred_check
        %p156 = pneg %p155
      $region22: #{tpu_custom_call.1} parent=5 // pred_check_branch
        %158 = sbr.rel (%p156) target = $region24
      $region23: #{tpu_custom_call.1} parent=5 // pred_region
        // Predicated region
        $region25: #{tpu_custom_call.1} parent=23 // pred_check
          %p159 = pneg %p34
        $region26: #{tpu_custom_call.1} parent=23 // pred_check_branch
          %161 = sbr.rel (%p159) target = $region28
        $region27: #{tpu_custom_call.1} parent=23 // pred_region
          %p162 = scmp.lt.s32.totalorder %s14, 1
          %s163 = scalar_select %p162, %s14, 1
          %s164 = smul.addr %s163, 8
          %s165 = scalar_lea.vmem %s0, %s164
        $region28: #{tpu_custom_call.1} parent=23 // pred_fallthru
          _
      $region24: #{tpu_custom_call.1} parent=5 // pred_fallthru
        _
      %p166 = scmp.le.s32.totalorder 1, %s14
      %p167 = scmp.lt.s32.totalorder %s14, 3
      %p168 = pnand %p166, %p167
      %p169 = pneg %p168
      // Predicated region
      $region29: #{tpu_custom_call.1} parent=5 // pred_check
        _
      $region30: #{tpu_custom_call.1} parent=5 // pred_check_branch
        %171 = sbr.rel (%p168) target = $region32
      $region31: #{tpu_custom_call.1} parent=5 // pred_region
        %s172 = ssub.s32 %s14, 1
        %p173 = scmp.lt.s32.totalorder %s19, 1
        %s174 = scalar_select %p173, %s19, 1
        %s175 = smul.addr %s174, 8
        %s176 = scalar_lea.vmem %s0, %s175
        %p177 = pneg %p40
        %p178 = pneg %p37
        %p179 = pneg %p61
        %p180 = pneg %p58
        %p181 = pneg %p82
        %p182 = pneg %p79
        %p183 = pneg %p108
        %p184 = pneg %p105
        %p185 = scmp.lt.s32.totalorder %s19, 1
        %s186 = scalar_select %p185, %s19, 1
        %s187 = smul.addr %s186, 8
        %s188 = scalar_lea.vmem %s3, %s187
        %p189 = pneg %p134
        %p190 = pneg %p131
        %s191 = sand.u32 %s121, 1
        %s192 = scalar_lea.sflag [#allocation3], %s191
        %s193 = sand.u32 %s121, 1
        %s194 = smul.addr %s193, 2
        %s195 = scalar_lea.vmem [#allocation2], %s194
        %p196 = scmp.lt.s32.totalorder %s19, 1
        %s197 = scalar_select %p196, %s19, 1
        %s198 = smul.addr %s197, 8
        %s199 = scalar_lea.vmem %s0, %s198
        %p200 = scmp.lt.s32.totalorder %s19, 1
        %s201 = scalar_select %p200, %s19, 1
        %s202 = smul.addr %s201, 8
        %s203 = scalar_lea.vmem %s3, %s202
        %v204 = vld [vmem:[%s199] sm:$0xff]
        %vm205 = vcmask 31744
        %v206 = vsel %vm205, %v204, 0.0
        %v207 = vrot.slane %v206, 4
        %v208 = vadd.f32 %v206, %v207
        %v209 = vrot.slane %v208, 2
        %v210 = vadd.f32 %v208, %v209
        %v211 = vrot.slane %v210, 1
        %v212 = vadd.f32 %v210, %v211
        %v213 = vrcp.pop 8.0
        %v214 = vmul.f32 %v212, %v213
        %v215 = vsub.f32 %v204, %v214
        %v216 = vmul.f32 %v215, %v215
        %v217 = vsel %vm205, %v216, 0.0
        %v218 = vrot.slane %v217, 4
        %v219 = vadd.f32 %v217, %v218
        %v220 = vrot.slane %v219, 2
        %v221 = vadd.f32 %v219, %v220
        %v222 = vrot.slane %v221, 1
        %v223 = vadd.f32 %v221, %v222
        %v224 = vmul.f32 %v223, %v213
        %v225 = vadd.f32 %v224, 1e-05
        %v226 = vrsqrt.pop %v225
        %v227 = vmul.f32 %v225, %v226
        %v228 = vld [vmem:[%s1] sm:$0x1]
        %v229 = vld [vmem:[%s2] sm:$0x1]
        %v230 = vmul.f32 %v228, %v226
        %v231 = vmul.f32 %v214, %v230
        %v232 = vsub.f32 %v229, %v231
        %v234 = vlaneseq
        %v235 = vshrl.u32 %v234, 7
        %v236 = vsub.s32 0, %v235
        %v237 = vrot.slane %v230, %v236
        %v239 = vmul.f32 %v204, %v237
        %v241 = vlaneseq
        %v242 = vshrl.u32 %v241, 7
        %v243 = vsub.s32 0, %v242
        %v244 = vrot.slane %v232, %v243
        %v246 = vadd.f32 %v239, %v244
        %247 = vst.msk [vmem:[%s203] sm:$0xff] %vm205, %v246
        %vm248 = vcmask 1040384
        %v249 = vsel %vm248, %v214, %v227
        %vm250 = vcmask 25600
        %251 = vst.msk [vmem:[%s195] sm:$0x3] %vm250, %v249
        %p252 = scmp.lt.s32.totalorder %s19, 1
        %s253 = scalar_select %p252, %s19, 1
        %s254 = smul.addr %s253, 8
        %s255 = scalar_lea.vmem %s3, %s254
        %s256 = sand.u32 %s121, 1
        %s257 = scalar_lea.sflag [#allocation3], %s256
        %s258 = sand.u32 %s121, 1
        %s259 = smul.addr %s258, 2
        %s260 = scalar_lea.vmem [#allocation2], %s259
        // Predicated region
        $region33: #{tpu_custom_call.1} parent=31 // pred_check
          %p261 = pneg %p105
        $region34: #{tpu_custom_call.1} parent=31 // pred_check_branch
          %263 = sbr.rel (%p261) target = $region36
        $region35: #{tpu_custom_call.1} parent=31 // pred_region
          _
        $region36: #{tpu_custom_call.1} parent=31 // pred_fallthru
          _
        // Predicated region
        $region37: #{tpu_custom_call.1} parent=31 // pred_check
          %p264 = pneg %p131
        $region38: #{tpu_custom_call.1} parent=31 // pred_check_branch
          %266 = sbr.rel (%p264) target = $region40
        $region39: #{tpu_custom_call.1} parent=31 // pred_region
          %s268 = ssub.s32 32, 32
          %269 = vsyncadd %s257, %s268
          %s270 = smul.addr %s19, 32
          %s271 = scalar_lea.hbm %s4, %s270
          %s273 = sshll.u32 %s260, 4
          %s274 = int_to_ptr.vmem [resolvable:$true] %s273
          %276 = dma.vmem_to_hbm [thread:$0]  %s274, 32, %s271, %s257
        $region40: #{tpu_custom_call.1} parent=31 // pred_fallthru
          _
      $region32: #{tpu_custom_call.1} parent=5 // pred_fallthru
        _
      %p277 = scmp.le.s32.totalorder 2, %s14
      // Predicated region
      $region41: #{tpu_custom_call.1} parent=5 // pred_check
        %p278 = pneg %p277
      $region42: #{tpu_custom_call.1} parent=5 // pred_check_branch
        %280 = sbr.rel (%p278) target = $region44
      $region43: #{tpu_custom_call.1} parent=5 // pred_region
        %s281 = ssub.s32 %s14, 2
        // Predicated region
        $region45: #{tpu_custom_call.1} parent=43 // pred_check
          %p282 = pneg %p111
        $region46: #{tpu_custom_call.1} parent=43 // pred_check_branch
          %284 = sbr.rel (%p282) target = $region48
        $region47: #{tpu_custom_call.1} parent=43 // pred_region
          %p285 = scmp.lt.s32.totalorder %s20, 1
          %s286 = scalar_select %p285, %s20, 1
          %s287 = smul.addr %s286, 8
          %s288 = scalar_lea.vmem %s3, %s287
        $region48: #{tpu_custom_call.1} parent=43 // pred_fallthru
          _
        // Predicated region
        $region49: #{tpu_custom_call.1} parent=43 // pred_check
          %p289 = pneg %p137
        $region50: #{tpu_custom_call.1} parent=43 // pred_check_branch
          %291 = sbr.rel (%p289) target = $region52
        $region51: #{tpu_custom_call.1} parent=43 // pred_region
          %s292 = sand.u32 %s122, 1
          %s293 = scalar_lea.sflag [#allocation3], %s292
          %s294 = sand.u32 %s122, 1
          %s295 = smul.addr %s294, 2
          %s296 = scalar_lea.vmem [#allocation2], %s295
          %297 = dma.done %s293, 32
        $region52: #{tpu_custom_call.1} parent=43 // pred_fallthru
          _
      $region44: #{tpu_custom_call.1} parent=5 // pred_fallthru
        _
    $region6: #{tpu_custom_call.1} parent=1 // loop_footer
      %s18 = sadd.s32 1, %s14
    $region7: #{tpu_custom_call.1} parent=1 // loop_footer_branch
      %13 = sbr.rel target = $region3
    $region8: #{tpu_custom_call.1} parent=1 // loop_exit
      _
    %298 = vsyncpa [#allocation3], 1
    %s299 = scalar_lea.sflag [#allocation3], 1
    %300 = vsyncpa %s299, 1

</llo_original>
